<compile_context>
chip_gen: v5e
topology: v5e:2x2
jax: 0.10.0
libtpu: 0.0.40
codegen_flags: <defaults>
</compile_context>

<pallas_src>
import jax
import jax.numpy as jnp
from jax.experimental import pallas as pl
from jax.experimental.pallas import tpu as pltpu


def _round_up(x, m):
    return ((x + m - 1) // m) * m


# ---------------------------------------------------------------------------
# Kernel: fused twin-head MLP forward on one (TB, ...) batch tile.
# ---------------------------------------------------------------------------
def qnetwork_fused_kernel(state_ref, action_ref,
                          w1s_ref, w1a_ref, b1_ref,
                          w2_ref, b2_ref,
                          w3_ref, b3_ref,
                          q_ref):
    # Matmul operand dtype comes from the packed weights: f32 (exact parity)
    # or bf16 (v6e/v7x MXU fast path). Accumulation is always f32; bias adds
    # and ReLU stay f32 so the epilogue is v5e-safe.
    mm = w1s_ref.dtype

    # Layer 1 (both heads, concat-free): (TB, 2H)
    h = jnp.dot(state_ref[...].astype(mm), w1s_ref[...],
                preferred_element_type=jnp.float32)
    h = h + jnp.dot(action_ref[...].astype(mm), w1a_ref[...],
                    preferred_element_type=jnp.float32)
    h = jnp.maximum(h + b1_ref[...], 0.0)

    # Layer 2 (block-diagonal => heads stay independent): (TB, 2H)
    h = jnp.dot(h.astype(mm), w2_ref[...],
                preferred_element_type=jnp.float32) + b2_ref[...]
    h = jnp.maximum(h, 0.0)

    # Layer 3: (TB, 2) output; col 0 = q1, col 1 = q2.
    q_ref[...] = jnp.dot(h.astype(mm), w3_ref[...],
                         preferred_element_type=jnp.float32) + b3_ref[...]


# ---------------------------------------------------------------------------
# Parameter packing: PyTorch-equivalent per-layer params -> fused layout.
# ---------------------------------------------------------------------------
def pack_params(params, num_inputs, matmul_dtype=jnp.float32):
    H = params["w1"].shape[1]
    f32 = jnp.float32

    w1c = jnp.concatenate([params["w1"], params["w4"]], axis=1)      # (D, 2H)
    w1s = w1c[:num_inputs].astype(matmul_dtype)                      # (S, 2H)
    w1a = w1c[num_inputs:].astype(matmul_dtype)                      # (A, 2H)
    b1c = jnp.concatenate([params["b1"], params["b4"]], axis=1).astype(f32)

    zH = jnp.zeros((H, H), f32)
    w2c = jnp.block([[params["w2"], zH],
                     [zH, params["w5"]]]).astype(matmul_dtype)       # (2H, 2H)
    b2c = jnp.concatenate([params["b2"], params["b5"]], axis=1).astype(f32)

    z1 = jnp.zeros((H, 1), f32)
    w3c = jnp.block([[params["w3"], z1],
                     [z1, params["w6"]]]).astype(matmul_dtype)       # (2H, 2)
    b3c = jnp.concatenate([params["b3"], params["b6"]], axis=1).astype(f32)

    return w1s, w1a, b1c, w2c, b2c, w3c, b3c


# ---------------------------------------------------------------------------
# Forward wrapper.
# ---------------------------------------------------------------------------
def qnetwork_forward(state, action, params, *, block_b=2048,
                     matmul_dtype=jnp.float32, min_rows_per_core=512):
    """Twin-Q forward. state: (B, S), action: (B, A). Returns (q1, q2), each (B, 1).

    matmul_dtype=jnp.bfloat16 enables the v6e/v7x MXU fast path (f32
    accumulation kept); use only if ~1e-2 tolerance vs the f32 reference is
    acceptable. Default f32 preserves 1e-5 parity.
    """
    B, S = state.shape
    A = action.shape[1]
    H2 = 2 * params["w1"].shape[1]

    w1s, w1a, b1c, w2c, b2c, w3c, b3c = pack_params(params, S, matmul_dtype)

    # ---- Batch tiling (feedback items 1-3) --------------------------------
    block_b = _round_up(block_b, 8)
    n_tiles = pl.cdiv(B, block_b)
    # v7x has 2 TensorCores: ensure >= 2 "parallel" tiles once the batch is
    # big enough to be worth splitting (no-op on 1-TC v5e/v6e, and avoids
    # pointless padding for tiny batches).
    if n_tiles < 2 and B >= 2 * min_rows_per_core:
        n_tiles = 2
    # Balance tile size instead of padding B up to a full block_b multiple.
    TB = _round_up(pl.cdiv(B, n_tiles), 8)
    B_pad = n_tiles * TB
    if B_pad != B:
        pad = B_pad - B
        state = jnp.pad(state, ((0, pad), (0, 0)))
        action = jnp.pad(action, ((0, pad), (0, 0)))

    # ---- Cost estimate for XLA scheduling around the custom call ----------
    D = S + A
    flops = 2 * B_pad * (D * H2 + H2 * H2 + H2 * 2)
    weight_bytes = sum(int(a.size) * a.dtype.itemsize
                       for a in (w1s, w1a, b1c, w2c, b2c, w3c, b3c))
    bytes_accessed = B_pad * (S + A + 2) * 4 + weight_bytes

    def resident(x):
        # Full-array block, constant index -> stays resident in VMEM across
        # all grid steps (no re-DMA).
        return pl.BlockSpec(x.shape, lambda i: (0, 0))

    q = pl.pallas_call(
        qnetwork_fused_kernel,
        out_shape=jax.ShapeDtypeStruct((B_pad, 2), jnp.float32),
        grid=(n_tiles,),
        in_specs=[
            pl.BlockSpec((TB, S), lambda i: (i, 0)),   # state tile
            pl.BlockSpec((TB, A), lambda i: (i, 0)),   # action tile
            resident(w1s), resident(w1a), resident(b1c),
            resident(w2c), resident(b2c),
            resident(w3c), resident(b3c),
        ],
        out_specs=pl.BlockSpec((TB, 2), lambda i: (i, 0)),
        compiler_params=pltpu.CompilerParams(
            dimension_semantics=("parallel",)),        # batch tiles across TCs (v7x)
        cost_estimate=pl.CostEstimate(
            flops=int(flops),
            transcendentals=0,
            bytes_accessed=int(bytes_accessed)),
    )(state, action, w1s, w1a, b1c, w2c, b2c, w3c, b3c)

    q = q[:B]
    return q[:, 0:1], q[:, 1:2]


# ---------------------------------------------------------------------------
# Init (matches torch xavier_uniform_(gain=1) + zero bias) and JAX reference.
# ---------------------------------------------------------------------------
def xavier_uniform(key, fan_in, fan_out):
    bound = jnp.sqrt(6.0 / (fan_in + fan_out))
    return jax.random.uniform(key, (fan_in, fan_out), jnp.float32, -bound, bound)


def init_qnetwork_params(key, num_inputs, num_actions, hidden_dim=32):
    d = num_inputs + num_actions
    ks = jax.random.split(key, 6)
    return {
        "w1": xavier_uniform(ks[0], d, hidden_dim), "b1": jnp.zeros((1, hidden_dim), jnp.float32),
        "w2": xavier_uniform(ks[1], hidden_dim, hidden_dim), "b2": jnp.zeros((1, hidden_dim), jnp.float32),
        "w3": xavier_uniform(ks[2], hidden_dim, 1), "b3": jnp.zeros((1, 1), jnp.float32),
        "w4": xavier_uniform(ks[3], d, hidden_dim), "b4": jnp.zeros((1, hidden_dim), jnp.float32),
        "w5": xavier_uniform(ks[4], hidden_dim, hidden_dim), "b5": jnp.zeros((1, hidden_dim), jnp.float32),
        "w6": xavier_uniform(ks[5], hidden_dim, 1), "b6": jnp.zeros((1, 1), jnp.float32),
    }


def qnetwork_reference(state, action, params):
    """Pure-JAX reference of the PyTorch forward, for correctness checking."""
    xu = jnp.concatenate([state, action], axis=1)
    h1 = jax.nn.relu(xu @ params["w1"] + params["b1"])
    h1 = jax.nn.relu(h1 @ params["w2"] + params["b2"])
    q1 = h1 @ params["w3"] + params["b3"]
    h2 = jax.nn.relu(xu @ params["w4"] + params["b4"])
    h2 = jax.nn.relu(h2 @ params["w5"] + params["b5"])
    q2 = h2 @ params["w6"] + params["b6"]
    return q1, q2


if __name__ == "__main__":
    key = jax.random.PRNGKey(0)
    k_state, k_action, k_params, k_state2, k_action2 = jax.random.split(key, 5)

    num_inputs = 12
    num_actions = 4
    hidden_dim = 32
    params = init_qnetwork_params(k_params, num_inputs, num_actions, hidden_dim)

    # --- Small-shape check (matches the module's natural small sizes) -------
    batch = 8
    state = jax.random.normal(k_state, (batch, num_inputs), jnp.float32)
    action = jax.random.normal(k_action, (batch, num_actions), jnp.float32)

    q1, q2 = qnetwork_forward(state, action, params)
    jax.block_until_ready((q1, q2))

    q1_ref, q2_ref = qnetwork_reference(state, action, params)
    assert q1.shape == (batch, 1) and q2.shape == (batch, 1)
    assert jnp.allclose(q1, q1_ref, atol=1e-5, rtol=1e-5)
    assert jnp.allclose(q2, q2_ref, atol=1e-5, rtol=1e-5)

    # --- Multi-tile check: exercises the balanced-tile / >=2-tile grid path --
    batch_l = 2304   # not a multiple of block_b -> balanced TB, 2 parallel tiles
    state_l = jax.random.normal(k_state2, (batch_l, num_inputs), jnp.float32)
    action_l = jax.random.normal(k_action2, (batch_l, num_actions), jnp.float32)

    q1_l, q2_l = qnetwork_forward(state_l, action_l, params)
    jax.block_until_ready((q1_l, q2_l))

    q1_lr, q2_lr = qnetwork_reference(state_l, action_l, params)
    assert q1_l.shape == (batch_l, 1) and q2_l.shape == (batch_l, 1)
    assert jnp.allclose(q1_l, q1_lr, atol=2e-5, rtol=2e-5)
    assert jnp.allclose(q2_l, q2_lr, atol=2e-5, rtol=2e-5)

    print("KERNEL_OK")
</pallas_src>

<mosaic_0001>
module attributes {stable_mosaic.version = 11 : i64} {
  func.func @qnetwork_fused_kernel(%arg0: i32, %arg1: memref<8x12xf32, #tpu.memory_space<vmem>>, %arg2: memref<8x4xf32, #tpu.memory_space<vmem>>, %arg3: memref<12x64xf32, #tpu.memory_space<vmem>>, %arg4: memref<4x64xf32, #tpu.memory_space<vmem>>, %arg5: memref<1x64xf32, #tpu.memory_space<vmem>>, %arg6: memref<64x64xf32, #tpu.memory_space<vmem>>, %arg7: memref<1x64xf32, #tpu.memory_space<vmem>>, %arg8: memref<64x2xf32, #tpu.memory_space<vmem>>, %arg9: memref<1x2xf32, #tpu.memory_space<vmem>>, %arg10: memref<8x2xf32, #tpu.memory_space<vmem>>) attributes {dimension_semantics = [#tpu.dimension_semantics<parallel>], iteration_bounds = array<i64: 1>, scalar_prefetch = 0 : i64, scratch_operands = 0 : i64, tpu.core_type = #tpu.core_type<tc>, window_params = [{transform_indices = @transform_0, window_bounds = array<i64: 8, 12>}, {transform_indices = @transform_1, window_bounds = array<i64: 8, 4>}, {pipeline_mode = #tpu.pipeline_mode<synchronous>, transform_indices = @transform_2, window_bounds = array<i64: 12, 64>}, {pipeline_mode = #tpu.pipeline_mode<synchronous>, transform_indices = @transform_3, window_bounds = array<i64: 4, 64>}, {pipeline_mode = #tpu.pipeline_mode<synchronous>, transform_indices = @transform_4, window_bounds = array<i64: 1, 64>}, {pipeline_mode = #tpu.pipeline_mode<synchronous>, transform_indices = @transform_5, window_bounds = array<i64: 64, 64>}, {pipeline_mode = #tpu.pipeline_mode<synchronous>, transform_indices = @transform_6, window_bounds = array<i64: 1, 64>}, {pipeline_mode = #tpu.pipeline_mode<synchronous>, transform_indices = @transform_7, window_bounds = array<i64: 64, 2>}, {pipeline_mode = #tpu.pipeline_mode<synchronous>, transform_indices = @transform_8, window_bounds = array<i64: 1, 2>}, {transform_indices = @transform_9, window_bounds = array<i64: 8, 2>}]} {
    %c0 = arith.constant 0 : index
    %c0_0 = arith.constant 0 : index
    %0 = vector.load %arg1[%c0, %c0_0] : memref<8x12xf32, #tpu.memory_space<vmem>>, vector<8x12xf32>
    %c0_1 = arith.constant 0 : index
    %c0_2 = arith.constant 0 : index
    %1 = vector.load %arg3[%c0_1, %c0_2] : memref<12x64xf32, #tpu.memory_space<vmem>>, vector<12x64xf32>
    %cst = arith.constant dense<0.000000e+00> : vector<8x64xf32>
    %2 = tpu.matmul %0, %1, %cst {dimension_numbers = #tpu.dot_dimension_numbers<[1], [0], [0], [1], [0, 0, 1, 1], [], []>} : vector<8x12xf32>, vector<12x64xf32>, vector<8x64xf32> -> vector<8x64xf32>
    %c0_3 = arith.constant 0 : index
    %c0_4 = arith.constant 0 : index
    %3 = vector.load %arg2[%c0_3, %c0_4] : memref<8x4xf32, #tpu.memory_space<vmem>>, vector<8x4xf32>
    %c0_5 = arith.constant 0 : index
    %c0_6 = arith.constant 0 : index
    %4 = vector.load %arg4[%c0_5, %c0_6] : memref<4x64xf32, #tpu.memory_space<vmem>>, vector<4x64xf32>
    %cst_7 = arith.constant dense<0.000000e+00> : vector<8x64xf32>
    %5 = tpu.matmul %3, %4, %cst_7 {dimension_numbers = #tpu.dot_dimension_numbers<[1], [0], [0], [1], [0, 0, 1, 1], [], []>} : vector<8x4xf32>, vector<4x64xf32>, vector<8x64xf32> -> vector<8x64xf32>
    %6 = arith.addf %2, %5 : vector<8x64xf32>
    %c0_8 = arith.constant 0 : index
    %c0_9 = arith.constant 0 : index
    %7 = vector.load %arg5[%c0_8, %c0_9] : memref<1x64xf32, #tpu.memory_space<vmem>>, vector<1x64xf32>
    %8 = vector.broadcast %7 : vector<1x64xf32> to vector<8x64xf32>
    %9 = arith.addf %6, %8 : vector<8x64xf32>
    %cst_10 = arith.constant 0.000000e+00 : f32
    %10 = vector.broadcast %cst_10 : f32 to vector<8x64xf32>
    %11 = arith.maximumf %9, %10 : vector<8x64xf32>
    %c0_11 = arith.constant 0 : index
    %c0_12 = arith.constant 0 : index
    %12 = vector.load %arg6[%c0_11, %c0_12] : memref<64x64xf32, #tpu.memory_space<vmem>>, vector<64x64xf32>
    %cst_13 = arith.constant dense<0.000000e+00> : vector<8x64xf32>
    %13 = tpu.matmul %11, %12, %cst_13 {dimension_numbers = #tpu.dot_dimension_numbers<[1], [0], [0], [1], [0, 0, 1, 1], [], []>} : vector<8x64xf32>, vector<64x64xf32>, vector<8x64xf32> -> vector<8x64xf32>
    %c0_14 = arith.constant 0 : index
    %c0_15 = arith.constant 0 : index
    %14 = vector.load %arg7[%c0_14, %c0_15] : memref<1x64xf32, #tpu.memory_space<vmem>>, vector<1x64xf32>
    %15 = vector.broadcast %14 : vector<1x64xf32> to vector<8x64xf32>
    %16 = arith.addf %13, %15 : vector<8x64xf32>
    %cst_16 = arith.constant 0.000000e+00 : f32
    %17 = vector.broadcast %cst_16 : f32 to vector<8x64xf32>
    %18 = arith.maximumf %16, %17 : vector<8x64xf32>
    %c0_17 = arith.constant 0 : index
    %c0_18 = arith.constant 0 : index
    %19 = vector.load %arg8[%c0_17, %c0_18] : memref<64x2xf32, #tpu.memory_space<vmem>>, vector<64x2xf32>
    %cst_19 = arith.constant dense<0.000000e+00> : vector<8x2xf32>
    %20 = tpu.matmul %18, %19, %cst_19 {dimension_numbers = #tpu.dot_dimension_numbers<[1], [0], [0], [1], [0, 0, 1, 1], [], []>} : vector<8x64xf32>, vector<64x2xf32>, vector<8x2xf32> -> vector<8x2xf32>
    %c0_20 = arith.constant 0 : index
    %c0_21 = arith.constant 0 : index
    %21 = vector.load %arg9[%c0_20, %c0_21] : memref<1x2xf32, #tpu.memory_space<vmem>>, vector<1x2xf32>
    %22 = vector.broadcast %21 : vector<1x2xf32> to vector<8x2xf32>
    %23 = arith.addf %20, %22 : vector<8x2xf32>
    %c0_22 = arith.constant 0 : index
    %c0_23 = arith.constant 0 : index
    %24 = vector.load %arg10[%c0_22, %c0_23] : memref<8x2xf32, #tpu.memory_space<vmem>>, vector<8x2xf32>
    tpu.vector_store %arg10[%c0_22, %c0_23], %23 {strides = array<i32>} : memref<8x2xf32, #tpu.memory_space<vmem>>, vector<8x2xf32>,
    return
  }
  func.func @transform_0(%arg0: i32) -> (i32, i32) {
    %c0_i32 = arith.constant 0 : i32
    %c0_i32_0 = arith.constant 0 : i32
    return %arg0, %c0_i32 : i32, i32
  }
  func.func @transform_1(%arg0: i32) -> (i32, i32) {
    %c0_i32 = arith.constant 0 : i32
    %c0_i32_0 = arith.constant 0 : i32
    return %arg0, %c0_i32 : i32, i32
  }
  func.func @transform_2(%arg0: i32) -> (i32, i32) {
    %c0_i32 = arith.constant 0 : i32
    %c0_i32_0 = arith.constant 0 : i32
    %c0_i32_1 = arith.constant 0 : i32
    return %c0_i32, %c0_i32_0 : i32, i32
  }
  func.func @transform_3(%arg0: i32) -> (i32, i32) {
    %c0_i32 = arith.constant 0 : i32
    %c0_i32_0 = arith.constant 0 : i32
    %c0_i32_1 = arith.constant 0 : i32
    return %c0_i32, %c0_i32_0 : i32, i32
  }
  func.func @transform_4(%arg0: i32) -> (i32, i32) {
    %c0_i32 = arith.constant 0 : i32
    %c0_i32_0 = arith.constant 0 : i32
    %c0_i32_1 = arith.constant 0 : i32
    return %c0_i32, %c0_i32_0 : i32, i32
  }
  func.func @transform_5(%arg0: i32) -> (i32, i32) {
    %c0_i32 = arith.constant 0 : i32
    %c0_i32_0 = arith.constant 0 : i32
    %c0_i32_1 = arith.constant 0 : i32
    return %c0_i32, %c0_i32_0 : i32, i32
  }
  func.func @transform_6(%arg0: i32) -> (i32, i32) {
    %c0_i32 = arith.constant 0 : i32
    %c0_i32_0 = arith.constant 0 : i32
    %c0_i32_1 = arith.constant 0 : i32
    return %c0_i32, %c0_i32_0 : i32, i32
  }
  func.func @transform_7(%arg0: i32) -> (i32, i32) {
    %c0_i32 = arith.constant 0 : i32
    %c0_i32_0 = arith.constant 0 : i32
    %c0_i32_1 = arith.constant 0 : i32
    return %c0_i32, %c0_i32_0 : i32, i32
  }
  func.func @transform_8(%arg0: i32) -> (i32, i32) {
    %c0_i32 = arith.constant 0 : i32
    %c0_i32_0 = arith.constant 0 : i32
    %c0_i32_1 = arith.constant 0 : i32
    return %c0_i32, %c0_i32_0 : i32, i32
  }
  func.func @transform_9(%arg0: i32) -> (i32, i32) {
    %c0_i32 = arith.constant 0 : i32
    %c0_i32_0 = arith.constant 0 : i32
    return %arg0, %c0_i32 : i32, i32
  }
}

</mosaic_0001>

<llo_original>
// kernel: tpu_custom_call.1
$region0: #{tpu_custom_call.1}
  #allocation0 [shape = 'u32[]', space=smem, size = 0x4, offset = 0x4, fixed_abs, tag = 'smem constant byte address 0x4 - core index']
  #allocation1 [shape = 'u32[72,128]{1,0:T(1,128)}', space=vmem, size = 0x9000, scoped, tag = 'internal scratch']
  %s0 = inlined_call_operand.hbm [shape: f32[8,12], index: 0, kind: input, shape index: {}]
  %s1 = inlined_call_operand.vmem [shape: f32[8,4], index: 1, kind: input, shape index: {}]
  %s2 = inlined_call_operand.vmem [shape: f32[12,64], index: 2, kind: input, shape index: {}]
  %s3 = inlined_call_operand.hbm [shape: f32[4,64], index: 3, kind: input, shape index: {}]
  %s4 = inlined_call_operand.vmem [shape: f32[1,64], index: 4, kind: input, shape index: {}]
  %s5 = inlined_call_operand.vmem [shape: f32[64,64], index: 5, kind: input, shape index: {}]
  %s6 = inlined_call_operand.hbm [shape: f32[1,64], index: 6, kind: input, shape index: {}]
  %s7 = inlined_call_operand.vmem [shape: f32[64,2], index: 7, kind: input, shape index: {}]
  %s8 = inlined_call_operand.vmem [shape: f32[1,2], index: 8, kind: input, shape index: {}]
  %s9 = inlined_call_operand.vmem [shape: f32[8,2], index: 9, kind: output, shape index: {}]
  %s10 = sld [smem:[#allocation0]]
  $region58: #{tpu_custom_call.1} parent=0
    _
  %s12 = ssub.s32 1, %s10
  %s13 = scalar_select 0, %s12, %s10
  $region1: #{tpu_custom_call.1} parent=0
    #allocation2 [shape = 'u8[4096]{0}', space=vmem, size = 0x1000, scoped, tag = 'input window, operand 0, single buffered']
    #allocation3 [shape = 's32[1]{0}', space=sflag, size = 0x4, scoped, tag = 'scoped memory for tpu_custom_call.1']
    #allocation4 [shape = 'u8[2048]{0}', space=vmem, size = 0x800, scoped, tag = 'input window, operand 3, single buffered']
    #allocation5 [shape = 's32[1]{0}', space=sflag, size = 0x4, scoped, tag = 'scoped memory for tpu_custom_call.1']
    #allocation6 [shape = 'u8[512]{0}', space=vmem, size = 0x400, scoped, tag = 'input window, operand 6, single buffered']
    %14 = vsyncpa [#allocation3], 0
    %15 = vsyncpa [#allocation5], 0
    // Predicated region
    $region2: #{tpu_custom_call.1} parent=1 // pred_check
      _
    $region3: #{tpu_custom_call.1} parent=1 // pred_check_branch
      %17 = sbr.rel (0) target = $region5
    $region4: #{tpu_custom_call.1} parent=1 // pred_region
      %19 = vsyncadd [#allocation3], 0
      %s21 = sshll.u32 %s0, 4
      %s22 = int_to_ptr.hbm [resolvable:$true] %s21
      %s23 = sshll.u32 [#allocation2], 4
      %s24 = int_to_ptr.vmem [resolvable:$true] %s23
      %26 = dma.hbm_to_vmem [thread:$0]  %s22, 128, %s24, [#allocation3]
    $region5: #{tpu_custom_call.1} parent=1 // pred_fallthru
      _
    // Predicated region
    $region6: #{tpu_custom_call.1} parent=1 // pred_check
      _
    $region7: #{tpu_custom_call.1} parent=1 // pred_check_branch
      %28 = sbr.rel (0) target = $region9
    $region8: #{tpu_custom_call.1} parent=1 // pred_region
      _
    $region9: #{tpu_custom_call.1} parent=1 // pred_fallthru
      _
    // Predicated region
    $region10: #{tpu_custom_call.1} parent=1 // pred_check
      _
    $region11: #{tpu_custom_call.1} parent=1 // pred_check_branch
      %30 = sbr.rel (0) target = $region13
    $region12: #{tpu_custom_call.1} parent=1 // pred_region
      _
    $region13: #{tpu_custom_call.1} parent=1 // pred_fallthru
      _
    // Predicated region
    $region14: #{tpu_custom_call.1} parent=1 // pred_check
      _
    $region15: #{tpu_custom_call.1} parent=1 // pred_check_branch
      %32 = sbr.rel (0) target = $region17
    $region16: #{tpu_custom_call.1} parent=1 // pred_region
      %34 = vsyncadd [#allocation5], 0
      %s36 = sshll.u32 %s3, 4
      %s37 = int_to_ptr.hbm [resolvable:$true] %s36
      %s38 = sshll.u32 [#allocation4], 4
      %s39 = int_to_ptr.vmem [resolvable:$true] %s38
      %41 = dma.hbm_to_vmem [thread:$0]  %s37, 64, %s39, [#allocation5]
    $region17: #{tpu_custom_call.1} parent=1 // pred_fallthru
      _
    // Predicated region
    $region18: #{tpu_custom_call.1} parent=1 // pred_check
      _
    $region19: #{tpu_custom_call.1} parent=1 // pred_check_branch
      %43 = sbr.rel (0) target = $region21
    $region20: #{tpu_custom_call.1} parent=1 // pred_region
      _
    $region21: #{tpu_custom_call.1} parent=1 // pred_fallthru
      _
    // Predicated region
    $region22: #{tpu_custom_call.1} parent=1 // pred_check
      _
    $region23: #{tpu_custom_call.1} parent=1 // pred_check_branch
      %45 = sbr.rel (0) target = $region25
    $region24: #{tpu_custom_call.1} parent=1 // pred_region
      _
    $region25: #{tpu_custom_call.1} parent=1 // pred_fallthru
      _
    // Predicated region
    $region26: #{tpu_custom_call.1} parent=1 // pred_check
      _
    $region27: #{tpu_custom_call.1} parent=1 // pred_check_branch
      %47 = sbr.rel (0) target = $region29
    $region28: #{tpu_custom_call.1} parent=1 // pred_region
      %49 = vsyncadd [#allocation5], 0
      %s51 = sshll.u32 %s6, 4
      %s52 = int_to_ptr.hbm [resolvable:$true] %s51
      %s53 = sshll.u32 [#allocation6], 4
      %s54 = int_to_ptr.vmem [resolvable:$true] %s53
      %56 = dma.hbm_to_vmem [thread:$0]  %s52, 16, %s54, [#allocation5]
    $region29: #{tpu_custom_call.1} parent=1 // pred_fallthru
      _
    // Predicated region
    $region30: #{tpu_custom_call.1} parent=1 // pred_check
      _
    $region31: #{tpu_custom_call.1} parent=1 // pred_check_branch
      %58 = sbr.rel (0) target = $region33
    $region32: #{tpu_custom_call.1} parent=1 // pred_region
      _
    $region33: #{tpu_custom_call.1} parent=1 // pred_fallthru
      _
    // Predicated region
    $region34: #{tpu_custom_call.1} parent=1 // pred_check
      _
    $region35: #{tpu_custom_call.1} parent=1 // pred_check_branch
      %60 = sbr.rel (0) target = $region37
    $region36: #{tpu_custom_call.1} parent=1 // pred_region
      _
    $region37: #{tpu_custom_call.1} parent=1 // pred_fallthru
      _
    // Predicated region
    $region38: #{tpu_custom_call.1} parent=1 // pred_check
      _
    $region39: #{tpu_custom_call.1} parent=1 // pred_check_branch
      %62 = sbr.rel (0) target = $region41
    $region40: #{tpu_custom_call.1} parent=1 // pred_region
      %64 = dma.done [#allocation3], 128
    $region41: #{tpu_custom_call.1} parent=1 // pred_fallthru
      _
    // Predicated region
    $region42: #{tpu_custom_call.1} parent=1 // pred_check
      _
    $region43: #{tpu_custom_call.1} parent=1 // pred_check_branch
      %66 = sbr.rel (0) target = $region45
    $region44: #{tpu_custom_call.1} parent=1 // pred_region
      %68 = dma.done [#allocation5], 64
    $region45: #{tpu_custom_call.1} parent=1 // pred_fallthru
      _
    // Predicated region
    $region46: #{tpu_custom_call.1} parent=1 // pred_check
      _
    $region47: #{tpu_custom_call.1} parent=1 // pred_check_branch
      %70 = sbr.rel (0) target = $region49
    $region48: #{tpu_custom_call.1} parent=1 // pred_region
      %72 = dma.done [#allocation5], 16
    $region49: #{tpu_custom_call.1} parent=1 // pred_fallthru
      _
    %v73 = vld [vmem:[#allocation2] sm:$0xff]
    %v74 = vld [vmem:[%s2] sm:$0xff]
    %v75 = vld [vmem:[%s2 + $0x8] sm:$0xf]
    %v76 = vld [vmem:[%s1] sm:$0xff]
    %v77 = vld [vmem:[#allocation4] sm:$0xf]
    %vm78 = vcmask 31744
    %v80 = vsel %vm78, %v76, 0
    %vm82 = vcmask 1043456
    %v84 = vsel %vm82, %v77, 0
    %86 = vmatpush.msra.mxu0 0.0
    %87 = vmatpush.msra.mxu0 0.0
    %88 = vmatpush.msra.mxu0 0.0
    %89 = vmatpush.msra.mxu0 0.0
    %90 = vmatpush.msra.mxu0 0.0
    %91 = vmatpush.msra.mxu0 0.0
    %92 = vmatpush.msra.mxu0 0.0
    %93 = vmatpush.msra.mxu0 0.0
    %94 = vmatpush.msra.mxu0 0.0
    %95 = vmatpush.msra.mxu0 0.0
    %96 = vmatpush.msra.mxu0 0.0
    %97 = vmatpush.msra.mxu0 0.0
    %98 = vmatpush.msra.mxu0 0.0
    %99 = vmatpush.msra.mxu0 0.0
    %100 = vmatpush.msra.mxu0 0.0
    %101 = vmatpush.msra.mxu0 %v84
    %102 = vmatmul.f32.gmra.mxu0 %v80
    %v103 = vpop.f32.mrf.mxu0
    %v104 = vadd.f32 0.0, %v103
    %105 = vdwg.mxu0
    %vm106 = vcmask 97280
    %v108 = vsel %vm106, %v73, 0
    %v111 = vsel %vm82, %v75, 0
    %113 = vmatpush.msra.mxu0 0.0
    %114 = vmatpush.msra.mxu0 0.0
    %115 = vmatpush.msra.mxu0 0.0
    %116 = vmatpush.msra.mxu0 0.0
    %117 = vmatpush.msra.mxu0 0.0
    %118 = vmatpush.msra.mxu0 0.0
    %119 = vmatpush.msra.mxu0 0.0
    %120 = vmatpush.msra.mxu0 0.0
    %121 = vmatpush.msra.mxu0 0.0
    %122 = vmatpush.msra.mxu0 0.0
    %123 = vmatpush.msra.mxu0 0.0
    %124 = vmatpush.msra.mxu0 0.0
    %125 = vmatpush.msra.mxu0 0.0
    %126 = vmatpush.msra.mxu0 0.0
    %127 = vmatpush.msra.mxu0 %v111
    %128 = vmatpush.msra.mxu0 %v74
    %129 = vmatmul.f32.gmra.mxu0 %v108
    %v130 = vpop.f32.mrf.mxu0
    %v131 = vadd.f32 %v104, %v130
    %132 = vdwg.mxu0
    %v133 = vld [vmem:[%s4] sm:$0x1]
    %v135 = vperm.slane %v133, 0
    %v137 = vadd.f32 %v131, %v135
    %v138 = vmax.f32 %v137, 0.0
    %v139 = vld [vmem:[%s5] sm:$0xff]
    %v140 = vld [vmem:[%s5 + $0x8] sm:$0xff]
    %v141 = vld [vmem:[%s5 + $0x10] sm:$0xff]
    %v142 = vld [vmem:[%s5 + $0x18] sm:$0xff]
    %v143 = vld [vmem:[%s5 + $0x20] sm:$0xff]
    %v144 = vld [vmem:[%s5 + $0x28] sm:$0xff]
    %v145 = vld [vmem:[%s5 + $0x30] sm:$0xff]
    %v146 = vld [vmem:[%s5 + $0x38] sm:$0xff]
    %v147 = vld [vmem:[#allocation6] sm:$0x1]
    %v149 = vperm.slane %v147, 0
    %vm151 = vcmask 523264
    %v153 = vsel %vm151, %v138, 0
    %155 = vmatpush.msra.mxu0 0.0
    %156 = vmatpush.msra.mxu0 0.0
    %157 = vmatpush.msra.mxu0 0.0
    %158 = vmatpush.msra.mxu0 0.0
    %159 = vmatpush.msra.mxu0 0.0
    %160 = vmatpush.msra.mxu0 0.0
    %161 = vmatpush.msra.mxu0 0.0
    %162 = vmatpush.msra.mxu0 0.0
    %163 = vmatpush.msra.mxu0 %v146
    %164 = vmatpush.msra.mxu0 %v145
    %165 = vmatpush.msra.mxu0 %v144
    %166 = vmatpush.msra.mxu0 %v143
    %167 = vmatpush.msra.mxu0 %v142
    %168 = vmatpush.msra.mxu0 %v141
    %169 = vmatpush.msra.mxu0 %v140
    %170 = vmatpush.msra.mxu0 %v139
    %171 = vmatmul.f32.gmra.mxu0 %v153
    %v172 = vpop.f32.mrf.mxu0
    %v173 = vadd.f32 %v149, %v172
    %174 = vdwg.mxu0
    %v175 = vmax.f32 %v173, 0.0
    %v176 = vld [vmem:[%s7] sm:$0xff]
    %v177 = vld [vmem:[%s7 + $0x8] sm:$0xff]
    %v178 = vld [vmem:[%s7 + $0x10] sm:$0xff]
    %v179 = vld [vmem:[%s7 + $0x18] sm:$0xff]
    %v180 = vld [vmem:[%s7 + $0x20] sm:$0xff]
    %v181 = vld [vmem:[%s7 + $0x28] sm:$0xff]
    %v182 = vld [vmem:[%s7 + $0x30] sm:$0xff]
    %v183 = vld [vmem:[%s7 + $0x38] sm:$0xff]
    %v184 = vld [vmem:[%s8] sm:$0x1]
    %v186 = vperm.slane %v184, 0
    %v189 = vsel %vm151, %v175, 0
    %191 = vmatpush.msra.mxu0 0.0
    %192 = vmatpush.msra.mxu0 0.0
    %193 = vmatpush.msra.mxu0 0.0
    %194 = vmatpush.msra.mxu0 0.0
    %195 = vmatpush.msra.mxu0 0.0
    %196 = vmatpush.msra.mxu0 0.0
    %197 = vmatpush.msra.mxu0 0.0
    %198 = vmatpush.msra.mxu0 0.0
    %199 = vmatpush.msra.mxu0 %v183
    %200 = vmatpush.msra.mxu0 %v182
    %201 = vmatpush.msra.mxu0 %v181
    %202 = vmatpush.msra.mxu0 %v180
    %203 = vmatpush.msra.mxu0 %v179
    %204 = vmatpush.msra.mxu0 %v178
    %205 = vmatpush.msra.mxu0 %v177
    %206 = vmatpush.msra.mxu0 %v176
    %207 = vmatmul.f32.gmra.mxu0 %v189
    %v208 = vpop.f32.mrf.mxu0
    %v209 = vadd.f32 %v186, %v208
    %210 = vdwg.mxu0
    %vm211 = vcmask 15360
    %212 = vst.msk [vmem:[%s9] sm:$0xff] %vm211, %v209
    // Predicated region
    $region50: #{tpu_custom_call.1} parent=1 // pred_check
      _
    $region51: #{tpu_custom_call.1} parent=1 // pred_check_branch
      %214 = sbr.rel (0) target = $region53
    $region52: #{tpu_custom_call.1} parent=1 // pred_region
      _
    $region53: #{tpu_custom_call.1} parent=1 // pred_fallthru
      _
    // Predicated region
    $region54: #{tpu_custom_call.1} parent=1 // pred_check
      _
    $region55: #{tpu_custom_call.1} parent=1 // pred_check_branch
      %216 = sbr.rel (0) target = $region57
    $region56: #{tpu_custom_call.1} parent=1 // pred_region
      _
    $region57: #{tpu_custom_call.1} parent=1 // pred_fallthru
      _
    %217 = vsyncpa [#allocation3], 1
    %218 = vsyncpa [#allocation5], 1

</llo_original>
